<compile_context>
chip_gen: v6e
topology: v6e:2x2x1
jax: 0.10.0
libtpu: 0.0.40
codegen_flags: <defaults>
</compile_context>

<pallas_src>
import functools

import jax
import jax.numpy as jnp
from jax.experimental import pallas as pl
from jax.experimental.pallas import tpu as pltpu


def _anm_tile_kernel(pos_ref, pred_ref, tgt_ref, out_ref, *,
                     tau, a_scale, b_scale, gx_scale, gy_scale,
                     C, W, TH, accumulate):
    """One (image n, H-tile h) grid step.

    pos_ref  : (2, L) int32 resident [row-in-tile; col-in-row] map
    pred_ref : (1, C, L) logits block, L = TH * W
    tgt_ref  : (1, 1, L) int8/int32 class indices
    out_ref  : (1, 1, L) per-image accumulator (accumulate=True) or
               per-(n, h) partial (accumulate=False); reduced in the wrapper.
    """
    L = TH * W

    x = pred_ref[0].astype(jnp.float32)                      # (C, L)
    tgt = tgt_ref[0].astype(jnp.int32)                       # (1, L)

    # ---- softmax statistics: C exps + 1 reciprocal per pixel ----------------
    m = jnp.max(x, axis=0, keepdims=True)                    # (1, L)
    e = jnp.exp(x - m)                                       # (C, L)
    s = jnp.sum(e, axis=0, keepdims=True)                    # (1, L)
    # One reciprocal per pixel + broadcast multiply over C (instead of C
    # divides).  approx=True would move it fully onto the EUP vrcp slot; keep
    # the exact form to stay faithful to the module (flip only if a bundle
    # dump shows VALU as the binding slot).
    inv_s = pl.reciprocal(s, approx=False)                   # (1, L)
    conf = inv_s                                             # max_c softmax == 1/s

    # Target-channel probability without a one-hot NCHW tensor.
    class_ids = jax.lax.broadcasted_iota(jnp.int32, (C, L), 0)
    e_t = jnp.sum(jnp.where(class_ids == tgt, e, 0.0), axis=0, keepdims=True)
    p_t = e_t * inv_s                                        # (1, L)

    # ---- per-pixel CE / uncertainty terms (one log each), pre-scaled --------
    gate = (conf > tau).astype(jnp.float32)
    contrib = (-a_scale) * gate * jnp.log(p_t + 1e-6)
    contrib = contrib + (-b_scale) * (1.0 - conf) * jnp.log(1.0 - conf + 1e-6)

    # ---- within-tile total variation via XLU rolls ---------------------------
    # Masks come from rolling the resident (row, col) map with the same
    # pltpu.roll as the data, so they are correct for either roll-direction
    # convention and need no iota / integer division in the kernel.  Channel
    # sums are taken before the mask so no (C, L) masked temp is materialised.
    if (W > 1 and gy_scale != 0.0) or (TH > 1 and gx_scale != 0.0):
        probs = e * inv_s                                    # (C, L)
        pm = pos_ref[...]                                    # (2, L) int32
        row, col = pm[0:1, :], pm[1:2, :]

        if W > 1 and gy_scale != 0.0:
            dy_w = 0.5 if (TH == 1 and W == 2) else 1.0      # roll involution
            p_r = pltpu.roll(probs, shift=L - 1, axis=1)
            pm_r = pltpu.roll(pm, shift=L - 1, axis=1)
            mask = (jnp.abs(pm_r[1:2, :] - col) == 1) & (pm_r[0:1, :] == row)
            dsum = jnp.sum(jnp.abs(p_r - probs), axis=0, keepdims=True)
            contrib = contrib + jnp.where(mask, (gy_scale * dy_w) * dsum, 0.0)

        if TH > 1 and gx_scale != 0.0:
            dx_w = 0.5 if TH == 2 else 1.0                   # roll involution
            p_r = pltpu.roll(probs, shift=L - W, axis=1)
            pm_r = pltpu.roll(pm, shift=L - W, axis=1)
            mask = jnp.abs(pm_r[0:1, :] - row) == 1
            dsum = jnp.sum(jnp.abs(p_r - probs), axis=0, keepdims=True)
            contrib = contrib + jnp.where(mask, (gx_scale * dx_w) * dsum, 0.0)

    if accumulate:
        h = pl.program_id(1)

        @pl.when(h == 0)
        def _():
            out_ref[0] = contrib

        @pl.when(h > 0)
        def _():
            out_ref[0] = out_ref[0] + contrib
    else:
        out_ref[0] = contrib


def _vmem_limit_bytes():
    """~3/4 of the chip's VMEM: ~96 MiB on v5e/v6e (128 MiB), ~48 MiB on v7x (64 MiB)."""
    try:
        cap = int(getattr(pltpu.get_tpu_info(), "vmem_capacity_bytes", 0) or 0)
    except Exception:
        cap = 0
    if cap <= 0:
        cap = 64 * 1024 * 1024          # conservative default (v7x per-core VMEM)
    return max(32 << 20, min((3 * cap) // 4, 100 << 20))


def _choose_tile_h(H, W, C, pred_itemsize, vmem_limit):
    """Largest lane-aligned H-tile whose full VMEM footprint (double-buffered
    inputs + output + live f32 intermediates) fits the per-generation budget
    and whose logits block stays in the ~4-8 MiB sweet spot."""
    cands = [th for th in range(1, H + 1)
             if H % th == 0 and (th * W) % 128 == 0]
    if not cands:
        return None
    budget = int(vmem_limit * 0.85)                  # headroom for Mosaic internals
    blk_cap = (8 << 20) if vmem_limit > (48 << 20) else (4 << 20)

    def footprint(th):
        L = th * W
        pred_blk = C * L * pred_itemsize             # one logits block
        total = (2 * pred_blk                        # double-buffered logits
                 + 2 * L                             # double-buffered int8 targets
                 + 2 * L * 4                         # output block
                 + 2 * 2 * L * 4                     # resident (2, L) int32 pos map
                 + 5 * C * L * 4                     # live (C, L) f32 intermediates
                 + 8 * L * 4)                        # live (1, L) temps
        return pred_blk, total

    ok = [th for th in cands
          if footprint(th)[1] <= budget and footprint(th)[0] <= blk_cap]
    if ok:
        return max(ok)
    fits = [th for th in cands if footprint(th)[1] <= budget]
    return min(fits) if fits else min(cands)


def adaptive_noise_loss(pred, target, *, alpha=0.6, beta=0.3, gamma=0.1,
                        tau=0.5, tile_h=None, h_parallel=None):
    """pred: (N, C, H, W) float32/bfloat16, target: (N, H, W) int -> f32 scalar."""
    N, C, H, W = pred.shape
    assert target.shape == (N, H, W)

    vmem_limit = _vmem_limit_bytes()

    if tile_h is None:
        tile_h = _choose_tile_h(H, W, C, jnp.dtype(pred.dtype).itemsize, vmem_limit)
        if tile_h is None:
            # TODO(synk): no lane-aligned H-tile exists (H*W has no multiple-of-128
            # tiling); the roll-based TV would touch padded lanes, so fall back to
            # the plain-JAX path for these (rare) shapes.
            return _reference_loss(pred, target, alpha=alpha, beta=beta,
                                   gamma=gamma, tau=tau)
    TH = int(tile_h)
    assert H % TH == 0, "tile_h must divide H"
    assert (TH * W) % 128 == 0, "tile_h * W must be a multiple of 128"
    n_h = H // TH
    L = TH * W

    if h_parallel is None:
        # h-parallelism only buys anything on dual-TensorCore chips when the
        # image axis alone cannot feed both cores.
        h_parallel = (N == 1 and n_h > 1)

    # Lane-dense layout: fold (H, W) into one trailing axis of length H*W.
    pred_flat = pred.reshape(N, C, H * W)
    tgt_dtype = jnp.int8 if C <= 127 else jnp.int32
    tgt_flat = target.astype(tgt_dtype).reshape(N, 1, H * W)

    # Loop-invariant per-pixel (row-in-tile, col) map, resident in VMEM.
    rows = jnp.repeat(jnp.arange(TH, dtype=jnp.int32), W)
    cols = jnp.tile(jnp.arange(W, dtype=jnp.int32), TH)
    posmap = jnp.stack([rows, cols], axis=0)                 # (2, L)

    # Pre-scaled weights: alpha/beta/gamma and the mean denominators folded in.
    a_scale = alpha / (N * C * H * W)
    b_scale = beta / (N * H * W)
    # TODO(synk): H == 1 or W == 1 makes the corresponding torch.mean NaN (mean
    # of an empty tensor); we drop that term instead of emitting NaN.
    gx_scale = gamma / (N * C * (H - 1) * W) if H > 1 else 0.0
    gy_scale = gamma / (N * C * H * (W - 1)) if W > 1 else 0.0

    kernel = functools.partial(
        _anm_tile_kernel, tau=float(tau), a_scale=float(a_scale),
        b_scale=float(b_scale), gx_scale=float(gx_scale),
        gy_scale=float(gy_scale), C=C, W=W, TH=TH,
        accumulate=not h_parallel)

    if h_parallel:
        # One output block per (n, h): no revisiting, both axes can be split
        # across TensorCores.
        out_shape = jax.ShapeDtypeStruct((N * n_h, 1, L), jnp.float32)
        out_spec = pl.BlockSpec((1, 1, L), lambda n, h: (n * n_h + h, 0, 0))
        dims = ("parallel", "parallel")
    else:
        # Per-image lane-dense accumulator, revisited across h (stays resident
        # in VMEM; written back to HBM once per image).
        out_shape = jax.ShapeDtypeStruct((N, 1, L), jnp.float32)
        out_spec = pl.BlockSpec((1, 1, L), lambda n, h: (n, 0, 0))
        dims = ("parallel", "arbitrary")

    partials = pl.pallas_call(
        kernel,
        out_shape=out_shape,
        grid=(N, n_h),
        in_specs=[
            pl.BlockSpec((2, L), lambda n, h: (0, 0)),        # posmap (resident)
            pl.BlockSpec((1, C, L), lambda n, h: (n, 0, h)),  # logits tile
            pl.BlockSpec((1, 1, L), lambda n, h: (n, 0, h)),  # targets tile
        ],
        out_specs=out_spec,
        compiler_params=pltpu.CompilerParams(
            dimension_semantics=dims,
            vmem_limit_bytes=int(vmem_limit)),
    )(posmap, pred_flat, tgt_flat)

    loss = jnp.sum(partials)

    # Vertical-TV pairs that straddle an H-tile boundary: 2*(n_h-1) rows per
    # image handled by a tiny plain-JAX term (keeps every kernel grid step
    # independent; <= 2/TH extra logit reads).
    if n_h > 1 and gx_scale != 0.0:
        a_rows = pred[:, :, TH - 1:H - 1:TH, :].astype(jnp.float32)
        b_rows = pred[:, :, TH:H:TH, :].astype(jnp.float32)
        pa = jax.nn.softmax(a_rows, axis=1)
        pb = jax.nn.softmax(b_rows, axis=1)
        loss = loss + gx_scale * jnp.sum(jnp.abs(pb - pa))
    return loss


def _reference_loss(pred, target, *, alpha=0.6, beta=0.3, gamma=0.1, tau=0.5):
    # Pure-JAX reference mirroring the PyTorch module.
    probs = jax.nn.softmax(pred.astype(jnp.float32), axis=1)
    C = pred.shape[1]
    one_hot = jnp.transpose(jax.nn.one_hot(target, C, dtype=jnp.float32),
                            (0, 3, 1, 2))
    conf = jnp.max(probs, axis=1)
    weight = (conf > tau).astype(jnp.float32)[:, None, :, :]
    ce_loss = jnp.mean(-weight * (one_hot * jnp.log(probs + 1e-6)))
    unc_loss = -jnp.mean((1.0 - conf) * jnp.log(1.0 - conf + 1e-6))
    dx = jnp.abs(probs[:, :, 1:, :] - probs[:, :, :-1, :])
    dy = jnp.abs(probs[:, :, :, 1:] - probs[:, :, :, :-1])
    smooth_loss = jnp.mean(dx) + jnp.mean(dy)
    return alpha * ce_loss + beta * unc_loss + gamma * smooth_loss


if __name__ == "__main__":
    key = jax.random.PRNGKey(0)
    k1, k2, k3, k4, k5, k6 = jax.random.split(key, 6)

    # --- main shape: multi-tile (wrapper boundary term) + auto tile ----------
    N, C, H, W = 2, 4, 16, 16
    pred = jax.random.normal(k1, (N, C, H, W), dtype=jnp.float32)
    target = jax.random.randint(k2, (N, H, W), 0, C, dtype=jnp.int32)
    ref = jax.block_until_ready(_reference_loss(pred, target))

    loss_tiled = jax.block_until_ready(adaptive_noise_loss(pred, target, tile_h=8))
    loss_auto = jax.block_until_ready(adaptive_noise_loss(pred, target))
    assert jnp.allclose(loss_tiled, ref, atol=2e-5, rtol=2e-4), (loss_tiled, ref)
    assert jnp.allclose(loss_auto, ref, atol=2e-5, rtol=2e-4), (loss_auto, ref)

    # --- TH == 2 vertical roll involution + h-parallel variant (N == 1) ------
    pred2 = jax.random.normal(k3, (1, 3, 4, 64), dtype=jnp.float32)
    tgt2 = jax.random.randint(k4, (1, 4, 64), 0, 3, dtype=jnp.int32)
    ref2 = _reference_loss(pred2, tgt2)
    loss2 = jax.block_until_ready(adaptive_noise_loss(pred2, tgt2, tile_h=2))
    assert jnp.allclose(loss2, ref2, atol=2e-5, rtol=2e-4), (loss2, ref2)

    # --- TH == 1, odd H: all vertical pairs via the wrapper boundary term ----
    pred3 = jax.random.normal(k5, (1, 2, 3, 128), dtype=jnp.float32)
    tgt3 = jax.random.randint(k6, (1, 3, 128), 0, 2, dtype=jnp.int32)
    ref3 = _reference_loss(pred3, tgt3)
    loss3 = jax.block_until_ready(adaptive_noise_loss(pred3, tgt3, tile_h=1))
    assert jnp.allclose(loss3, ref3, atol=2e-5, rtol=2e-4), (loss3, ref3)

    # --- bfloat16 logits at the boundary (kernel math stays f32) -------------
    pred_bf16 = pred.astype(jnp.bfloat16)
    ref_bf16 = _reference_loss(pred_bf16, target)
    loss_bf16 = jax.block_until_ready(
        adaptive_noise_loss(pred_bf16, target, tile_h=8))
    assert jnp.allclose(loss_bf16, ref_bf16, atol=2e-5, rtol=2e-4), (loss_bf16, ref_bf16)
    assert jnp.allclose(loss_bf16, ref, atol=2e-2, rtol=1e-1), (loss_bf16, ref)

    print("KERNEL_OK")
</pallas_src>

<mosaic_0001>
module attributes {stable_mosaic.version = 11 : i64} {
  func.func @_anm_tile_kernel(%arg0: i32, %arg1: i32, %arg2: memref<2x128xi32, #tpu.memory_space<vmem>>, %arg3: memref<1x4x128xf32, #tpu.memory_space<vmem>>, %arg4: memref<1x1x128xi8, #tpu.memory_space<vmem>>, %arg5: memref<1x1x128xf32, #tpu.memory_space<vmem>>) attributes {dimension_semantics = [#tpu.dimension_semantics<parallel>, #tpu.dimension_semantics<arbitrary>], iteration_bounds = array<i64: 2, 2>, scalar_prefetch = 0 : i64, scratch_operands = 0 : i64, tpu.core_type = #tpu.core_type<tc>, window_params = [{pipeline_mode = #tpu.pipeline_mode<synchronous>, transform_indices = @transform_0, window_bounds = array<i64: 2, 128>}, {transform_indices = @transform_1, window_bounds = array<i64: 1, 4, 128>}, {transform_indices = @transform_2, window_bounds = array<i64: 1, 1, 128>}, {transform_indices = @transform_3, window_bounds = array<i64: 1, 1, 128>}]} {
    %c0 = arith.constant 0 : index
    %c0_0 = arith.constant 0 : index
    %c0_1 = arith.constant 0 : index
    %0 = vector.load %arg3[%c0, %c0_0, %c0_1] : memref<1x4x128xf32, #tpu.memory_space<vmem>>, vector<1x4x128xf32>
    %1 = vector.shape_cast %0 : vector<1x4x128xf32> to vector<4x128xf32>
    %c0_2 = arith.constant 0 : index
    %c0_3 = arith.constant 0 : index
    %c0_4 = arith.constant 0 : index
    %2 = vector.load %arg4[%c0_2, %c0_3, %c0_4] : memref<1x1x128xi8, #tpu.memory_space<vmem>>, vector<1x1x128xi8>
    %3 = vector.shape_cast %2 : vector<1x1x128xi8> to vector<1x128xi8>
    %4 = arith.extsi %3 : vector<1x128xi8> to vector<1x128xi32>
    %cst = arith.constant dense<0xFF800000> : vector<128xf32>
    %5 = vector.multi_reduction <maximumf>, %1, %cst [0] : vector<4x128xf32> to vector<128xf32>
    %6 = vector.shape_cast %5 : vector<128xf32> to vector<1x128xf32>
    %7 = vector.broadcast %6 : vector<1x128xf32> to vector<4x128xf32>
    %8 = arith.subf %1, %7 : vector<4x128xf32>
    %9 = math.exp %8 : vector<4x128xf32>
    %cst_5 = arith.constant dense<0.000000e+00> : vector<128xf32>
    %10 = vector.multi_reduction <add>, %9, %cst_5 [0] : vector<4x128xf32> to vector<128xf32>
    %11 = vector.shape_cast %10 : vector<128xf32> to vector<1x128xf32>
    %12 = tpu.reciprocal %11 : vector<1x128xf32> -> vector<1x128xf32>
    %13 = tpu.iota {dimensions = array<i32: 0>} : vector<4x128xi32>
    %14 = vector.broadcast %4 : vector<1x128xi32> to vector<4x128xi32>
    %15 = arith.cmpi eq, %13, %14 : vector<4x128xi32>
    %cst_6 = arith.constant 0.000000e+00 : f32
    %16 = vector.broadcast %cst_6 : f32 to vector<4x128xf32>
    %17 = arith.select %15, %9, %16 : vector<4x128xi1>, vector<4x128xf32>
    %cst_7 = arith.constant dense<0.000000e+00> : vector<128xf32>
    %18 = vector.multi_reduction <add>, %17, %cst_7 [0] : vector<4x128xf32> to vector<128xf32>
    %19 = vector.shape_cast %18 : vector<128xf32> to vector<1x128xf32>
    %20 = arith.mulf %19, %12 : vector<1x128xf32>
    %cst_8 = arith.constant 5.000000e-01 : f32
    %21 = vector.broadcast %cst_8 : f32 to vector<1x128xf32>
    %22 = arith.cmpf ogt, %12, %21 : vector<1x128xf32>
    %23 = arith.extui %22 : vector<1x128xi1> to vector<1x128xi32>
    %24 = arith.sitofp %23 : vector<1x128xi32> to vector<1x128xf32>
    %cst_9 = arith.constant -2.92968762E-4 : f32
    %25 = vector.broadcast %cst_9 : f32 to vector<1x128xf32>
    %26 = arith.mulf %25, %24 : vector<1x128xf32>
    %cst_10 = arith.constant 9.99999997E-7 : f32
    %27 = vector.broadcast %cst_10 : f32 to vector<1x128xf32>
    %28 = arith.addf %20, %27 : vector<1x128xf32>
    %29 = math.log %28 : vector<1x128xf32>
    %30 = arith.mulf %26, %29 : vector<1x128xf32>
    %cst_11 = arith.constant 1.000000e+00 : f32
    %31 = vector.broadcast %cst_11 : f32 to vector<1x128xf32>
    %32 = arith.subf %31, %12 : vector<1x128xf32>
    %cst_12 = arith.constant -5.85937523E-4 : f32
    %33 = vector.broadcast %cst_12 : f32 to vector<1x128xf32>
    %34 = arith.mulf %33, %32 : vector<1x128xf32>
    %cst_13 = arith.constant 1.000000e+00 : f32
    %35 = vector.broadcast %cst_13 : f32 to vector<1x128xf32>
    %36 = arith.subf %35, %12 : vector<1x128xf32>
    %cst_14 = arith.constant 9.99999997E-7 : f32
    %37 = vector.broadcast %cst_14 : f32 to vector<1x128xf32>
    %38 = arith.addf %36, %37 : vector<1x128xf32>
    %39 = math.log %38 : vector<1x128xf32>
    %40 = arith.mulf %34, %39 : vector<1x128xf32>
    %41 = arith.addf %30, %40 : vector<1x128xf32>
    %42 = vector.broadcast %12 : vector<1x128xf32> to vector<4x128xf32>
    %43 = arith.mulf %9, %42 : vector<4x128xf32>
    %c0_15 = arith.constant 0 : index
    %c0_16 = arith.constant 0 : index
    %44 = vector.load %arg2[%c0_15, %c0_16] : memref<2x128xi32, #tpu.memory_space<vmem>>, vector<2x128xi32>
    %45 = vector.extract_strided_slice %44 {offsets = [0, 0], sizes = [1, 128], strides = [1, 1]} : vector<2x128xi32> to vector<1x128xi32>
    %46 = vector.extract_strided_slice %44 {offsets = [1, 0], sizes = [1, 128], strides = [1, 1]} : vector<2x128xi32> to vector<1x128xi32>
    %c127_i32 = arith.constant 127 : i32
    %47 = tpu.dynamic_rotate %43 by %c127_i32 dim 1 : vector<4x128xf32>, i32 -> vector<4x128xf32>
    %c127_i32_17 = arith.constant 127 : i32
    %48 = tpu.dynamic_rotate %44 by %c127_i32_17 dim 1 : vector<2x128xi32>, i32 -> vector<2x128xi32>
    %49 = vector.extract_strided_slice %48 {offsets = [1, 0], sizes = [1, 128], strides = [1, 1]} : vector<2x128xi32> to vector<1x128xi32>
    %50 = arith.subi %49, %46 : vector<1x128xi32>
    %51 = math.absi %50 : vector<1x128xi32>
    %c1_i32 = arith.constant 1 : i32
    %52 = vector.broadcast %c1_i32 : i32 to vector<1x128xi32>
    %53 = arith.cmpi eq, %51, %52 : vector<1x128xi32>
    %54 = vector.extract_strided_slice %48 {offsets = [0, 0], sizes = [1, 128], strides = [1, 1]} : vector<2x128xi32> to vector<1x128xi32>
    %55 = arith.cmpi eq, %54, %45 : vector<1x128xi32>
    %56 = arith.andi %53, %55 : vector<1x128xi1>
    %57 = arith.subf %47, %43 : vector<4x128xf32>
    %58 = math.absf %57 : vector<4x128xf32>
    %cst_18 = arith.constant dense<0.000000e+00> : vector<128xf32>
    %59 = vector.multi_reduction <add>, %58, %cst_18 [0] : vector<4x128xf32> to vector<128xf32>
    %60 = vector.shape_cast %59 : vector<128xf32> to vector<1x128xf32>
    %cst_19 = arith.constant 5.20833346E-5 : f32
    %61 = vector.broadcast %cst_19 : f32 to vector<1x128xf32>
    %62 = arith.mulf %61, %60 : vector<1x128xf32>
    %cst_20 = arith.constant 0.000000e+00 : f32
    %63 = vector.broadcast %cst_20 : f32 to vector<1x128xf32>
    %64 = arith.select %56, %62, %63 : vector<1x128xi1>, vector<1x128xf32>
    %65 = arith.addf %41, %64 : vector<1x128xf32>
    %c112_i32 = arith.constant 112 : i32
    %66 = tpu.dynamic_rotate %43 by %c112_i32 dim 1 : vector<4x128xf32>, i32 -> vector<4x128xf32>
    %c112_i32_21 = arith.constant 112 : i32
    %67 = tpu.dynamic_rotate %44 by %c112_i32_21 dim 1 : vector<2x128xi32>, i32 -> vector<2x128xi32>
    %68 = vector.extract_strided_slice %67 {offsets = [0, 0], sizes = [1, 128], strides = [1, 1]} : vector<2x128xi32> to vector<1x128xi32>
    %69 = arith.subi %68, %45 : vector<1x128xi32>
    %70 = math.absi %69 : vector<1x128xi32>
    %c1_i32_22 = arith.constant 1 : i32
    %71 = vector.broadcast %c1_i32_22 : i32 to vector<1x128xi32>
    %72 = arith.cmpi eq, %70, %71 : vector<1x128xi32>
    %73 = arith.subf %66, %43 : vector<4x128xf32>
    %74 = math.absf %73 : vector<4x128xf32>
    %cst_23 = arith.constant dense<0.000000e+00> : vector<128xf32>
    %75 = vector.multi_reduction <add>, %74, %cst_23 [0] : vector<4x128xf32> to vector<128xf32>
    %76 = vector.shape_cast %75 : vector<128xf32> to vector<1x128xf32>
    %cst_24 = arith.constant 5.20833346E-5 : f32
    %77 = vector.broadcast %cst_24 : f32 to vector<1x128xf32>
    %78 = arith.mulf %77, %76 : vector<1x128xf32>
    %cst_25 = arith.constant 0.000000e+00 : f32
    %79 = vector.broadcast %cst_25 : f32 to vector<1x128xf32>
    %80 = arith.select %72, %78, %79 : vector<1x128xi1>, vector<1x128xf32>
    %81 = arith.addf %65, %80 : vector<1x128xf32>
    %c0_i32 = arith.constant 0 : i32
    %82 = arith.cmpi eq, %arg1, %c0_i32 : i32
    %83 = arith.extui %82 : i1 to i32
    %c0_i32_26 = arith.constant 0 : i32
    %84 = arith.cmpi ne, %83, %c0_i32_26 : i32
    scf.if %84 {
      %c0_29 = arith.constant 0 : index
      %c0_30 = arith.constant 0 : index
      %c0_31 = arith.constant 0 : index
      %88 = vector.load %arg5[%c0_29, %c0_30, %c0_31] : memref<1x1x128xf32, #tpu.memory_space<vmem>>, vector<1x1x128xf32>
      %89 = vector.shape_cast %88 : vector<1x1x128xf32> to vector<1x128xf32>
      %90 = vector.shape_cast %81 : vector<1x128xf32> to vector<1x1x128xf32>
      tpu.vector_store %arg5[%c0_29, %c0_30, %c0_31], %90 {strides = array<i32>} : memref<1x1x128xf32, #tpu.memory_space<vmem>>, vector<1x1x128xf32>,
    } else {
    }
    %c0_i32_27 = arith.constant 0 : i32
    %85 = arith.cmpi sgt, %arg1, %c0_i32_27 : i32
    %86 = arith.extui %85 : i1 to i32
    %c0_i32_28 = arith.constant 0 : i32
    %87 = arith.cmpi ne, %86, %c0_i32_28 : i32
    scf.if %87 {
      %c0_29 = arith.constant 0 : index
      %c0_30 = arith.constant 0 : index
      %c0_31 = arith.constant 0 : index
      %88 = vector.load %arg5[%c0_29, %c0_30, %c0_31] : memref<1x1x128xf32, #tpu.memory_space<vmem>>, vector<1x1x128xf32>
      %89 = vector.shape_cast %88 : vector<1x1x128xf32> to vector<1x128xf32>
      %90 = arith.addf %89, %81 : vector<1x128xf32>
      %c0_32 = arith.constant 0 : index
      %c0_33 = arith.constant 0 : index
      %c0_34 = arith.constant 0 : index
      %91 = vector.load %arg5[%c0_32, %c0_33, %c0_34] : memref<1x1x128xf32, #tpu.memory_space<vmem>>, vector<1x1x128xf32>
      %92 = vector.shape_cast %91 : vector<1x1x128xf32> to vector<1x128xf32>
      %93 = vector.shape_cast %90 : vector<1x128xf32> to vector<1x1x128xf32>
      tpu.vector_store %arg5[%c0_32, %c0_33, %c0_34], %93 {strides = array<i32>} : memref<1x1x128xf32, #tpu.memory_space<vmem>>, vector<1x1x128xf32>,
    } else {
    }
    return
  }
  func.func @transform_0(%arg0: i32, %arg1: i32) -> (i32, i32) {
    %c0_i32 = arith.constant 0 : i32
    %c0_i32_0 = arith.constant 0 : i32
    %c0_i32_1 = arith.constant 0 : i32
    return %c0_i32, %c0_i32_0 : i32, i32
  }
  func.func @transform_1(%arg0: i32, %arg1: i32) -> (i32, i32, i32) {
    %c0_i32 = arith.constant 0 : i32
    %c0_i32_0 = arith.constant 0 : i32
    return %arg0, %c0_i32, %arg1 : i32, i32, i32
  }
  func.func @transform_2(%arg0: i32, %arg1: i32) -> (i32, i32, i32) {
    %c0_i32 = arith.constant 0 : i32
    %c0_i32_0 = arith.constant 0 : i32
    return %arg0, %c0_i32, %arg1 : i32, i32, i32
  }
  func.func @transform_3(%arg0: i32, %arg1: i32) -> (i32, i32, i32) {
    %c0_i32 = arith.constant 0 : i32
    %c0_i32_0 = arith.constant 0 : i32
    %c0_i32_1 = arith.constant 0 : i32
    return %arg0, %c0_i32, %c0_i32_0 : i32, i32, i32
  }
}

</mosaic_0001>

<llo_original>
// kernel: tpu_custom_call.1
$region0: #{tpu_custom_call.1}
  #allocation0 [shape = 'u32[]', space=smem, size = 0x4, offset = 0x4, fixed_abs, tag = 'smem constant byte address 0x4 - core index']
  #allocation1 [shape = 'u32[144,128]{1,0:T(1,128)}', space=vmem, size = 0x12000, scoped, tag = 'internal scratch']
  %s0 = inlined_call_operand.vmem [shape: s32[2,128], index: 0, kind: input, shape index: {}]
  %s1 = inlined_call_operand.hbm [shape: f32[2,4,256], index: 1, kind: input, shape index: {}]
  %s2 = inlined_call_operand.vmem [shape: s8[2,1,256], index: 2, kind: input, shape index: {}]
  %s3 = inlined_call_operand.hbm [shape: f32[2,1,128], index: 3, kind: output, shape index: {}]
  %s4 = sld [smem:[#allocation0]]
  $region57: #{tpu_custom_call.1} parent=0
    _
  %s6 = ssub.s32 1, %s4
  %s7 = scalar_select 0, %s6, %s4
  $region1: #{tpu_custom_call.1} parent=0
    #allocation2 [shape = 'u8[4096]{0}', space=vmem, size = 0x1000, scoped, tag = 'input window, operand 1']
    #allocation3 [shape = 's32[2]{0}', space=sflag, size = 0x8, scoped, tag = 'scoped memory for tpu_custom_call.1']
    #allocation4 [shape = 's32[2]{0}', space=sflag, size = 0x8, scoped, tag = 'scoped memory for tpu_custom_call.1']
    #allocation5 [shape = 'u8[1024]{0}', space=vmem, size = 0x400, scoped, tag = 'output window, operand 0']
    %8 = vsyncpa [#allocation3], 0
    %s9 = scalar_lea.sflag [#allocation3], 1
    %10 = vsyncpa %s9, 0
    %11 = vsyncpa [#allocation4], 0
    %s12 = scalar_lea.sflag [#allocation4], 1
    %13 = vsyncpa %s12, 0
    loop: start=0, step=1, limit=6
    $region2: #{tpu_custom_call.1} parent=1 // loop_pre_header
      _
    $region3: #{tpu_custom_call.1} parent=1 // loop_header
      %s15 = sphi 0, %s19
      %p16 = scmp.ge.s32.totalorder %s15, 6
      %s22 = sphi 0, %s34
      %s23 = sphi 0, %s30
      %s24 = sphi 0, %s22
      %s25 = sphi 0, %s23
      %s26 = sphi 0, %s24
      %s27 = sphi 0, %s25
      %s35 = sphi 0, %s35
      %s37 = sphi 0, %s35
      %s38 = sphi 0, %s37
      %s52 = sphi 0, %s38
      %s60 = sphi 0, %s62
      %s63 = sphi 0, %s60
      %s64 = sphi 0, %s63
      %s80 = sphi 0, %s64
      %s88 = sphi 0, %s90
      %s91 = sphi 0, %s88
      %s92 = sphi 0, %s91
      %s108 = sphi 0, %s92
      %s114 = sphi 0, %s116
      %s117 = sphi 0, %s114
      %s118 = sphi 0, %s117
      %s134 = sphi 0, %s118
    $region4: #{tpu_custom_call.1} parent=1 // loop_header_branch
      %18 = sbr.rel (%p16) target = $region8
    $region5: #{tpu_custom_call.1} parent=1 // loop_body
      %s20 = ssub.s32 %s15, 1
      %s21 = ssub.s32 %s15, 2
      %s28 = sadd.s32 1, %s23
      %p29 = scmp.ge.s32.totalorder %s28, 2
      %s30 = scalar_select %p29, 0, %s28
      %s31 = sadd.s32 1, %s22
      %s32 = scalar_select %p29, %s31, %s22
      %p33 = scmp.ge.s32.totalorder %s32, 2
      %s34 = scalar_select %p33, 0, %s32
      %s36 = sadd.s32 %s35, 1
      %p39 = scmp.eq.s32.totalorder %s15, 3
      %p40 = scmp.ne.s32.totalorder %s35, %s37
      %p41 = scmp.eq.s32.totalorder %s15, 0
      %p42 = por %p40, %p41
      %p43 = scmp.ne.s32.totalorder %s35, %s37
      %p44 = scmp.eq.s32.totalorder %s20, 3
      %p45 = por %p43, %p44
      %p46 = scmp.ne.s32.totalorder %s37, %s38
      %p47 = scmp.eq.s32.totalorder %s20, 0
      %p48 = por %p46, %p47
      %p49 = scmp.ne.s32.totalorder %s37, %s38
      %p50 = scmp.eq.s32.totalorder %s21, 3
      %p51 = por %p49, %p50
      %p53 = scmp.ne.s32.totalorder %s38, %s52
      %p54 = scmp.eq.s32.totalorder %s21, 0
      %p55 = por %p53, %p54
      %s56 = ssub.s32 %s22, %s34
      %s57 = ssub.s32 %s23, %s30
      %s58 = sor.u32 %s56, %s57
      %p59 = scmp.eq.s32.totalorder %s58, 0
      %s61 = sadd.s32 %s60, 1
      %s62 = scalar_select %p59, %s60, %s61
      %p65 = pneg %p59
      %p66 = scmp.eq.s32.totalorder %s15, 3
      %p67 = por %p65, %p66
      %p68 = scmp.ne.s32.totalorder %s60, %s63
      %p69 = scmp.eq.s32.totalorder %s15, 0
      %p70 = por %p68, %p69
      %p71 = scmp.ne.s32.totalorder %s60, %s63
      %p72 = scmp.eq.s32.totalorder %s20, 3
      %p73 = por %p71, %p72
      %p74 = scmp.ne.s32.totalorder %s63, %s64
      %p75 = scmp.eq.s32.totalorder %s20, 0
      %p76 = por %p74, %p75
      %p77 = scmp.ne.s32.totalorder %s63, %s64
      %p78 = scmp.eq.s32.totalorder %s21, 3
      %p79 = por %p77, %p78
      %p81 = scmp.ne.s32.totalorder %s64, %s80
      %p82 = scmp.eq.s32.totalorder %s21, 0
      %p83 = por %p81, %p82
      %s84 = ssub.s32 %s22, %s34
      %s85 = ssub.s32 %s23, %s30
      %s86 = sor.u32 %s84, %s85
      %p87 = scmp.eq.s32.totalorder %s86, 0
      %s89 = sadd.s32 %s88, 1
      %s90 = scalar_select %p87, %s88, %s89
      %p93 = pneg %p87
      %p94 = scmp.eq.s32.totalorder %s15, 3
      %p95 = por %p93, %p94
      %p96 = scmp.ne.s32.totalorder %s88, %s91
      %p97 = scmp.eq.s32.totalorder %s15, 0
      %p98 = por %p96, %p97
      %p99 = scmp.ne.s32.totalorder %s88, %s91
      %p100 = scmp.eq.s32.totalorder %s20, 3
      %p101 = por %p99, %p100
      %p102 = scmp.ne.s32.totalorder %s91, %s92
      %p103 = scmp.eq.s32.totalorder %s20, 0
      %p104 = por %p102, %p103
      %p105 = scmp.ne.s32.totalorder %s91, %s92
      %p106 = scmp.eq.s32.totalorder %s21, 3
      %p107 = por %p105, %p106
      %p109 = scmp.ne.s32.totalorder %s92, %s108
      %p110 = scmp.eq.s32.totalorder %s21, 0
      %p111 = por %p109, %p110
      %s112 = ssub.s32 %s22, %s34
      %p113 = scmp.eq.s32.totalorder %s112, 0
      %s115 = sadd.s32 %s114, 1
      %s116 = scalar_select %p113, %s114, %s115
      %p119 = pneg %p113
      %p120 = scmp.eq.s32.totalorder %s15, 3
      %p121 = por %p119, %p120
      %p122 = scmp.ne.s32.totalorder %s114, %s117
      %p123 = scmp.eq.s32.totalorder %s15, 0
      %p124 = por %p122, %p123
      %p125 = scmp.ne.s32.totalorder %s114, %s117
      %p126 = scmp.eq.s32.totalorder %s20, 3
      %p127 = por %p125, %p126
      %p128 = scmp.ne.s32.totalorder %s117, %s118
      %p129 = scmp.eq.s32.totalorder %s20, 0
      %p130 = por %p128, %p129
      %p131 = scmp.ne.s32.totalorder %s117, %s118
      %p132 = scmp.eq.s32.totalorder %s21, 3
      %p133 = por %p131, %p132
      %p135 = scmp.ne.s32.totalorder %s118, %s134
      %p136 = scmp.eq.s32.totalorder %s21, 0
      %p137 = por %p135, %p136
      %p138 = scmp.le.s32.totalorder 1, %s15
      %p139 = scmp.lt.s32.totalorder %s15, 5
      %p140 = pnand %p138, %p139
      %p141 = pneg %p140
      // Predicated region
      $region9: #{tpu_custom_call.1} parent=5 // pred_check
        _
      $region10: #{tpu_custom_call.1} parent=5 // pred_check_branch
        %143 = sbr.rel (%p140) target = $region12
      $region11: #{tpu_custom_call.1} parent=5 // pred_region
        %s144 = ssub.s32 %s15, 1
        // Predicated region
        $region13: #{tpu_custom_call.1} parent=11 // pred_check
          %p145 = pneg %p48
        $region14: #{tpu_custom_call.1} parent=11 // pred_check_branch
          %147 = sbr.rel (%p145) target = $region16
        $region15: #{tpu_custom_call.1} parent=11 // pred_region
          _
        $region16: #{tpu_custom_call.1} parent=11 // pred_fallthru
          _
      $region12: #{tpu_custom_call.1} parent=5 // pred_fallthru
        _
      %p148 = scmp.lt.s32.totalorder %s15, 4
      // Predicated region
      $region17: #{tpu_custom_call.1} parent=5 // pred_check
        %p149 = pneg %p148
      $region18: #{tpu_custom_call.1} parent=5 // pred_check_branch
        %151 = sbr.rel (%p149) target = $region20
      $region19: #{tpu_custom_call.1} parent=5 // pred_region
        // Predicated region
        $region21: #{tpu_custom_call.1} parent=19 // pred_check
          %p152 = pneg %p70
        $region22: #{tpu_custom_call.1} parent=19 // pred_check_branch
          %154 = sbr.rel (%p152) target = $region24
        $region23: #{tpu_custom_call.1} parent=19 // pred_region
          %s155 = sand.u32 %s60, 1
          %s156 = scalar_lea.sflag [#allocation3], %s155
          %s157 = sand.u32 %s60, 1
          %s158 = smul.addr %s157, 4
          %s159 = scalar_lea.vmem [#allocation2], %s158
          %s161 = ssub.s32 64, 64
          %162 = vsyncadd %s156, %s161
          %s163 = smul.addr %s22, 2
          %s164 = sadd.s32 %s23, %s163
          %s165 = smul.addr %s164, 64
          %s166 = scalar_lea.hbm %s1, %s165
          %s168 = sshll.u32 %s159, 4
          %s169 = int_to_ptr.vmem [resolvable:$true] %s168
          %171 = dma.hbm_to_vmem [thread:$0]  %s166, 64, %s169, %s156
        $region24: #{tpu_custom_call.1} parent=19 // pred_fallthru
          _
        // Predicated region
        $region25: #{tpu_custom_call.1} parent=19 // pred_check
          %p172 = pneg %p98
        $region26: #{tpu_custom_call.1} parent=19 // pred_check_branch
          %174 = sbr.rel (%p172) target = $region28
        $region27: #{tpu_custom_call.1} parent=19 // pred_region
          %p175 = scmp.lt.s32.totalorder %s22, 1
          %s176 = scalar_select %p175, %s22, 1
          %p177 = scmp.lt.s32.totalorder %s23, 1
          %s178 = scalar_select %p177, %s23, 1
          %s179 = smul.addr %s176, 2
          %s180 = sadd.s32 %s178, %s179
          %s181 = scalar_lea.vmem %s2, %s180
        $region28: #{tpu_custom_call.1} parent=19 // pred_fallthru
          _
      $region20: #{tpu_custom_call.1} parent=5 // pred_fallthru
        _
      %p182 = scmp.le.s32.totalorder 1, %s15
      %p183 = scmp.lt.s32.totalorder %s15, 5
      %p184 = pnand %p182, %p183
      %p185 = pneg %p184
      // Predicated region
      $region29: #{tpu_custom_call.1} parent=5 // pred_check
        _
      $region30: #{tpu_custom_call.1} parent=5 // pred_check_branch
        %187 = sbr.rel (%p184) target = $region32
      $region31: #{tpu_custom_call.1} parent=5 // pred_region
        %s188 = ssub.s32 %s15, 1
        %s189 = sand.u32 %s63, 1
        %s190 = scalar_lea.sflag [#allocation3], %s189
        %s191 = sand.u32 %s63, 1
        %s192 = smul.addr %s191, 4
        %s193 = scalar_lea.vmem [#allocation2], %s192
        // Predicated region
        $region33: #{tpu_custom_call.1} parent=31 // pred_check
          %p194 = pneg %p76
        $region34: #{tpu_custom_call.1} parent=31 // pred_check_branch
          %196 = sbr.rel (%p194) target = $region36
        $region35: #{tpu_custom_call.1} parent=31 // pred_region
          %197 = dma.done %s190, 64
        $region36: #{tpu_custom_call.1} parent=31 // pred_fallthru
          _
        %p198 = pneg %p48
        %p199 = pneg %p45
        %s200 = sand.u32 %s63, 1
        %s201 = scalar_lea.sflag [#allocation3], %s200
        %s202 = sand.u32 %s63, 1
        %s203 = smul.addr %s202, 4
        %s204 = scalar_lea.vmem [#allocation2], %s203
        %p205 = pneg %p76
        %p206 = pneg %p73
        %p207 = scmp.lt.s32.totalorder %s24, 1
        %s208 = scalar_select %p207, %s24, 1
        %p209 = scmp.lt.s32.totalorder %s25, 1
        %s210 = scalar_select %p209, %s25, 1
        %s211 = smul.addr %s208, 2
        %s212 = sadd.s32 %s210, %s211
        %s213 = scalar_lea.vmem %s2, %s212
        %p214 = pneg %p104
        %p215 = pneg %p101
        %p216 = pneg %p130
        %p217 = pneg %p127
        %s218 = sand.u32 %s117, 1
        %s219 = scalar_lea.sflag [#allocation4], %s218
        %s220 = sand.u32 %s117, 1
        %s221 = scalar_lea.vmem [#allocation5], %s220
        %p222 = scmp.lt.s32.totalorder %s24, 1
        %s223 = scalar_select %p222, %s24, 1
        %p224 = scmp.lt.s32.totalorder %s25, 1
        %s225 = scalar_select %p224, %s25, 1
        %s226 = smul.addr %s223, 2
        %s227 = sadd.s32 %s225, %s226
        %s228 = scalar_lea.vmem %s2, %s227
        %v229 = vld [vmem:[%s193] sm:$0xf]
        %v230 = vld [vmem:[%s228] sm:$0x1]
        %v231 = vunpack.c.0.s8 %v230
        %vm232 = vcmask 1043456
        %v233 = vsel %vm232, %v229, -inf
        %v234 = vrot.slane %v233, 4
        %v235 = vmax.f32 %v233, %v234
        %v236 = vrot.slane %v235, 2
        %v237 = vmax.f32 %v235, %v236
        %v238 = vrot.slane %v237, 1
        %v239 = vmax.f32 %v237, %v238
        %v240 = vsub.f32 %v229, %v239
        %v241 = vmul.f32 %v240, 1.442695
        %v242 = vpow.pop %v241
        %v243 = vsel %vm232, %v242, 0.0
        %v244 = vrot.slane %v243, 4
        %v245 = vadd.f32 %v243, %v244
        %v246 = vrot.slane %v245, 2
        %v247 = vadd.f32 %v245, %v246
        %v248 = vrot.slane %v247, 1
        %v249 = vadd.f32 %v247, %v248
        %v250 = vrcp.pop %v249
        %v251 = vlaneseq
        %v252 = vshrl.u32 %v251, 7
        %v253 = vlaneseq
        %v254 = vshrl.u32 %v253, 7
        %v255 = vsub.s32 0, %v254
        %v256 = vrot.slane %v231, %v255
        %vm257 = vcmp.eq.s32.totalorder %v252, %v256
        %v258 = vsel %vm257, %v242, 0.0
        %v259 = vsel %vm232, %v258, 0.0
        %v260 = vrot.slane %v259, 4
        %v261 = vadd.f32 %v259, %v260
        %v262 = vrot.slane %v261, 2
        %v263 = vadd.f32 %v261, %v262
        %v264 = vrot.slane %v263, 1
        %v265 = vadd.f32 %v263, %v264
        %v266 = vmul.f32 %v265, %v250
        %vm267 = vcmp.gt.f32.partialorder %v250, 0.5
        %v268 = vsel %vm267, 1, 0
        %v269 = vcvt.s32.f32 %v268
        %v270 = vmul.f32 %v269, -0.00029296876
        %v271 = vadd.f32 %v266, 1e-06
        %v272 = vlog2.pop %v271
        %v273 = vmul.f32 %v272, 0.6931472
        %v274 = vmul.f32 %v270, %v273
        %v275 = vsub.f32 1.0, %v250
        %v276 = vmul.f32 %v275, -0.0005859375
        %v277 = vadd.f32 %v275, 1e-06
        %v278 = vlog2.pop %v277
        %v279 = vmul.f32 %v278, 0.6931472
        %v280 = vmul.f32 %v276, %v279
        %v281 = vadd.f32 %v274, %v280
        %v282 = vmul.f32 %v242, %v250
        %v283 = vld [vmem:[%s0] sm:$0x3]
        %284 = vrot.lane.b32.xlu0 %v282, 127
        %v285 = vpop.permute.xlu0 %284
        %286 = vrot.lane.b32.xlu0 %v283, 127
        %v287 = vpop.permute.xlu0 %286
        %v288 = vsub.s32 %v287, %v283
        %vm289 = vcmp.lt.s32.totalorder %v288, 0
        %v290 = vsub.s32 0, %v288
        %v291 = vsel %vm289, %v290, %v288
        %vm292 = vcmp.eq.s32.totalorder %v291, 1
        %vm293 = vcmp.eq.s32.totalorder %v287, %v283
        %v294 = vsel %vm293, 1, 0
        %v295 = vrot.slane %v294, 7
        %vm296 = vcmp.ne.s32.totalorder %v295, 0
        %vm297 = vmand %vm292, %vm296
        %v298 = vsub.f32 %v285, %v282
        %v299 = vand.u32 2147483647, %v298
        %v300 = vsel %vm232, %v299, 0.0
        %v301 = vrot.slane %v300, 4
        %v302 = vadd.f32 %v300, %v301
        %v303 = vrot.slane %v302, 2
        %v304 = vadd.f32 %v302, %v303
        %v305 = vrot.slane %v304, 1
        %v306 = vadd.f32 %v304, %v305
        %v307 = vmul.f32 %v306, 5.2083335e-05
        %v308 = vsel %vm297, %v307, 0.0
        %v309 = vadd.f32 %v281, %v308
        %310 = vrot.lane.b32.xlu0 %v282, 112
        %v311 = vpop.permute.xlu0 %310
        %312 = vrot.lane.b32.xlu0 %v283, 112
        %v313 = vpop.permute.xlu0 %312
        %v314 = vsub.s32 %v313, %v283
        %vm315 = vcmp.lt.s32.totalorder %v314, 0
        %v316 = vsub.s32 0, %v314
        %v317 = vsel %vm315, %v316, %v314
        %vm318 = vcmp.eq.s32.totalorder %v317, 1
        %v319 = vsub.f32 %v311, %v282
        %v320 = vand.u32 2147483647, %v319
        %v321 = vsel %vm232, %v320, 0.0
        %v322 = vrot.slane %v321, 4
        %v323 = vadd.f32 %v321, %v322
        %v324 = vrot.slane %v323, 2
        %v325 = vadd.f32 %v323, %v324
        %v326 = vrot.slane %v325, 1
        %v327 = vadd.f32 %v325, %v326
        %v328 = vmul.f32 %v327, 5.2083335e-05
        %v329 = vsel %vm318, %v328, 0.0
        %v331 = vrot.slane %v329, 7
        %v333 = vadd.f32 %v309, %v331
        %p334 = scmp.eq.s32.totalorder %s25, 0
        // Predicated region
        $region37: #{tpu_custom_call.1} parent=31 // pred_check
          %p335 = pneg %p334
        $region38: #{tpu_custom_call.1} parent=31 // pred_check_branch
          %337 = sbr.rel (%p335) target = $region40
        $region39: #{tpu_custom_call.1} parent=31 // pred_region
          %338 = vst [vmem:[%s221 - $0x1] sm:$0x2] %v333
        $region40: #{tpu_custom_call.1} parent=31 // pred_fallthru
          _
        %p339 = scmp.gt.s32.totalorder %s25, 0
        // Predicated region
        $region41: #{tpu_custom_call.1} parent=31 // pred_check
          %p340 = pneg %p339
        $region42: #{tpu_custom_call.1} parent=31 // pred_check_branch
          %342 = sbr.rel (%p340) target = $region44
        $region43: #{tpu_custom_call.1} parent=31 // pred_region
          %v343 = vld [vmem:[%s221] sm:$0x1]
          %v346 = vunpack.c.l.s4 1966171168
          %v347 = vunpack.c.0.s8 %v346
          %v348 = vlaneseq
          %v349 = vshrl.u32 %v348, 7
          %v350 = vsub.s32 %v347, %v349
          %v351 = vrot.slane %v333, %v350
          %v352 = vcombine.high %v351, %v351
          %v354 = vunpack.c.l.s4 1966171168
          %v355 = vunpack.c.0.s8 %v354
          %v356 = vlaneseq
          %v357 = vshrl.u32 %v356, 7
          %v358 = vsub.s32 %v355, %v357
          %v359 = vrot.slane %v352, %v358
          %v361 = vadd.f32 %v343, %v359
          %362 = vst [vmem:[%s221] sm:$0x1] %v361
        $region44: #{tpu_custom_call.1} parent=31 // pred_fallthru
          _
        %s363 = sand.u32 %s117, 1
        %s364 = scalar_lea.sflag [#allocation4], %s363
        %s365 = sand.u32 %s117, 1
        %s366 = scalar_lea.vmem [#allocation5], %s365
        // Predicated region
        $region45: #{tpu_custom_call.1} parent=31 // pred_check
          %p367 = pneg %p127
        $region46: #{tpu_custom_call.1} parent=31 // pred_check_branch
          %369 = sbr.rel (%p367) target = $region48
        $region47: #{tpu_custom_call.1} parent=31 // pred_region
          %s371 = ssub.s32 16, 16
          %372 = vsyncadd %s364, %s371
          %s373 = smul.addr %s24, 16
          %s374 = scalar_lea.hbm %s3, %s373
          %s376 = sshll.u32 %s366, 4
          %s377 = int_to_ptr.vmem [resolvable:$true] %s376
          %379 = dma.vmem_to_hbm [thread:$0]  %s377, 16, %s374, %s364
        $region48: #{tpu_custom_call.1} parent=31 // pred_fallthru
          _
      $region32: #{tpu_custom_call.1} parent=5 // pred_fallthru
        _
      %p380 = scmp.le.s32.totalorder 2, %s15
      // Predicated region
      $region49: #{tpu_custom_call.1} parent=5 // pred_check
        %p381 = pneg %p380
      $region50: #{tpu_custom_call.1} parent=5 // pred_check_branch
        %383 = sbr.rel (%p381) target = $region52
      $region51: #{tpu_custom_call.1} parent=5 // pred_region
        %s384 = ssub.s32 %s15, 2
        // Predicated region
        $region53: #{tpu_custom_call.1} parent=51 // pred_check
          %p385 = pneg %p133
        $region54: #{tpu_custom_call.1} parent=51 // pred_check_branch
          %387 = sbr.rel (%p385) target = $region56
        $region55: #{tpu_custom_call.1} parent=51 // pred_region
          %s388 = sand.u32 %s118, 1
          %s389 = scalar_lea.sflag [#allocation4], %s388
          %s390 = sand.u32 %s118, 1
          %s391 = scalar_lea.vmem [#allocation5], %s390
          %392 = dma.done %s389, 16
        $region56: #{tpu_custom_call.1} parent=51 // pred_fallthru
          _
      $region52: #{tpu_custom_call.1} parent=5 // pred_fallthru
        _
    $region6: #{tpu_custom_call.1} parent=1 // loop_footer
      %s19 = sadd.s32 1, %s15
    $region7: #{tpu_custom_call.1} parent=1 // loop_footer_branch
      %14 = sbr.rel target = $region3
    $region8: #{tpu_custom_call.1} parent=1 // loop_exit
      _
    %393 = vsyncpa [#allocation3], 1
    %s394 = scalar_lea.sflag [#allocation3], 1
    %395 = vsyncpa %s394, 1
    %396 = vsyncpa [#allocation4], 1
    %s397 = scalar_lea.sflag [#allocation4], 1
    %398 = vsyncpa %s397, 1

</llo_original>
